<compile_context>
chip_gen: v5e
topology: v5e:2x2
jax: 0.10.0
libtpu: 0.0.40
codegen_flags: <defaults>
</compile_context>

<pallas_src>
import functools

import jax
import jax.numpy as jnp
from jax.experimental import pallas as pl
from jax.experimental.pallas import tpu as pltpu


def _round_up(x, m):
    return -(-x // m) * m


def behavior_vae_kernel(
    state_ref,    # (bt, S)
    action_ref,   # (bt, A)
    noise_ref,    # (bt, L)   gaussian noise
    params_ref,   # (R, W)    packed weight/bias slab (replicated, DMA'd once)
    out_ref,      # (bt, 2L + A)  [mean | std | recon]
    *,
    dims,         # (S, A, L, H) static
    offs,         # static row offsets into the slab (all multiples of 8)
):
    S, A, L, H = dims
    (o_e1s, o_e1a, o_ew2, o_mlw, o_d1s, o_d1z, o_dw2, o_dw3, o_b) = offs
    f32 = jnp.float32

    state = state_ref[...]
    action = action_ref[...]

    # static, sublane-aligned views into the packed parameter slab
    ew1_s = params_ref[o_e1s:o_e1s + S, :H]
    ew1_a = params_ref[o_e1a:o_e1a + A, :H]
    ew2   = params_ref[o_ew2:o_ew2 + H, :H]
    mlw   = params_ref[o_mlw:o_mlw + H, :2 * L]     # fused [mean | log_std] head
    dw1_s = params_ref[o_d1s:o_d1s + S, :H]
    dw1_z = params_ref[o_d1z:o_d1z + L, :H]
    dw2   = params_ref[o_dw2:o_dw2 + H, :H]
    dw3   = params_ref[o_dw3:o_dw3 + H, :A]
    eb1 = params_ref[o_b + 0:o_b + 1, :H]
    eb2 = params_ref[o_b + 1:o_b + 2, :H]
    mlb = params_ref[o_b + 2:o_b + 3, :2 * L]
    db1 = params_ref[o_b + 3:o_b + 4, :H]
    db2 = params_ref[o_b + 4:o_b + 5, :H]
    db3 = params_ref[o_b + 5:o_b + 6, :A]

    # ---- encoder: Linear(S+A, H)+ReLU, Linear(H, H)+ReLU (split-K layer 1) ----
    h = (jnp.dot(state, ew1_s, preferred_element_type=f32)
         + jnp.dot(action, ew1_a, preferred_element_type=f32)
         + eb1)
    h = jnp.maximum(h, 0.0)
    h = jnp.maximum(jnp.dot(h, ew2, preferred_element_type=f32) + eb2, 0.0)

    # ---- fused latent heads: one (H, 2L) matmul, then split ----
    ml = jnp.dot(h, mlw, preferred_element_type=f32) + mlb
    mean = ml[:, :L]
    log_std = jnp.clip(ml[:, L:], -4.0, 15.0)
    std = jnp.exp(log_std)

    # ---- reparameterized sample ----
    z = mean + std * noise_ref[...]

    # ---- decoder: Linear(S+L, H)+ReLU, Linear(H, H)+ReLU, Linear(H, A)+Tanh ----
    d = (jnp.dot(state, dw1_s, preferred_element_type=f32)
         + jnp.dot(z, dw1_z, preferred_element_type=f32)
         + db1)
    d = jnp.maximum(d, 0.0)
    d = jnp.maximum(jnp.dot(d, dw2, preferred_element_type=f32) + db2, 0.0)
    recon = jnp.tanh(jnp.dot(d, dw3, preferred_element_type=f32) + db3)

    # single packed store; [mean | std] need no lane shift, only recon does.
    out_ref[...] = jnp.concatenate([mean, std, recon], axis=-1)


def pack_params(params, state_dim, action_dim, latent_dim, hidden_dim):
    """Pack all weights/biases into one lane-padded slab (do once, offline in prod)."""
    S, A, L, H = state_dim, action_dim, latent_dim, hidden_dim
    W = max(H, 2 * L, A)

    segments, offs = [], []
    row = 0

    def add(w):
        nonlocal row
        offs.append(row)
        r, c = w.shape
        seg = jnp.pad(w, ((0, _round_up(r, 8) - r), (0, W - c)))
        segments.append(seg)
        row += seg.shape[0]

    add(params["ew1"][:S])                                     # encoder L1, state rows
    add(params["ew1"][S:])                                     # encoder L1, action rows
    add(params["ew2"])                                         # encoder L2
    add(jnp.concatenate([params["mw"], params["lw"]], axis=1)) # fused [mean | log_std]
    add(params["dw1"][:S])                                     # decoder L1, state rows
    add(params["dw1"][S:])                                     # decoder L1, latent rows
    add(params["dw2"])                                         # decoder L2
    add(params["dw3"])                                         # decoder L3

    def brow(b):
        b = b.reshape(1, -1)
        return jnp.pad(b, ((0, 0), (0, W - b.shape[1])))

    bias = jnp.concatenate(
        [brow(params["eb1"]), brow(params["eb2"]),
         brow(jnp.concatenate([params["mb"], params["lb"]], axis=-1)),
         brow(params["db1"]), brow(params["db2"]), brow(params["db3"])],
        axis=0,
    )  # (6, W) -> padded to (8, W)
    add(bias)

    slab = jnp.concatenate(segments, axis=0)
    return slab, tuple(offs)


def _choose_batch_tile(B, max_tile=1024, split_threshold=256):
    # Big tiles amortize the ~0.35 us per-grid-step cost; for non-trivial
    # batches force >= 2 steps so v7x's two TensorCores both get work (free on
    # single-TC v5e/v6e); even split keeps ragged-tail waste minimal.
    if B <= split_threshold:
        return _round_up(B, 8)
    n_steps = max(2, -(-B // max_tile))
    return _round_up(-(-B // n_steps), 8)


def behavior_vae_forward(state, action, noise, packed_params, param_offsets,
                         *, dims, batch_tile=None):
    """BehaviorVAE.forward; returns (reconstructed_action, mean, std)."""
    S, A, L, H = dims
    B = state.shape[0]
    out_w = 2 * L + A

    if batch_tile is None:
        batch_tile = _choose_batch_tile(B)
    batch_tile = min(_round_up(batch_tile, 8), _round_up(B, 8))
    grid = (-(-B // batch_tile),)   # ragged last block masked by Pallas (no jnp.pad)

    kernel = functools.partial(behavior_vae_kernel, dims=dims, offs=param_offsets)
    slab_shape = packed_params.shape

    # VMEM is a non-issue at these sizes on all generations (tile 1024 is <1 MiB
    # double-buffered); set vmem_limit_bytes only if batch_tile/hidden_dim are
    # scaled far beyond this (v7x has 64 MiB physical, 32 MiB scoped default).
    out = pl.pallas_call(
        kernel,
        out_shape=jax.ShapeDtypeStruct((B, out_w), jnp.float32),
        grid=grid,
        in_specs=[
            pl.BlockSpec((batch_tile, S), lambda i: (i, 0)),
            pl.BlockSpec((batch_tile, A), lambda i: (i, 0)),
            pl.BlockSpec((batch_tile, L), lambda i: (i, 0)),
            pl.BlockSpec(slab_shape, lambda i: (0, 0)),   # replicated, DMA'd once
        ],
        out_specs=pl.BlockSpec((batch_tile, out_w), lambda i: (i, 0)),
        compiler_params=pltpu.CompilerParams(
            dimension_semantics=("parallel",),
        ),
    )(state, action, noise, packed_params)

    mean = out[:, :L]
    std = out[:, L:2 * L]
    recon = out[:, 2 * L:]
    return recon, mean, std


def init_linear(key, fan_in, fan_out):
    """PyTorch nn.Linear default init (uniform +-1/sqrt(fan_in)), W as (in, out)."""
    kw, kb = jax.random.split(key)
    bound = 1.0 / (fan_in ** 0.5)
    w = jax.random.uniform(kw, (fan_in, fan_out), jnp.float32, -bound, bound)
    b = jax.random.uniform(kb, (fan_out,), jnp.float32, -bound, bound)
    return w, b


def init_params(key, state_dim, action_dim, latent_dim, hidden_dim):
    keys = jax.random.split(key, 7)
    ew1, eb1 = init_linear(keys[0], state_dim + action_dim, hidden_dim)
    ew2, eb2 = init_linear(keys[1], hidden_dim, hidden_dim)
    mw, mb = init_linear(keys[2], hidden_dim, latent_dim)
    lw, lb = init_linear(keys[3], hidden_dim, latent_dim)
    dw1, db1 = init_linear(keys[4], state_dim + latent_dim, hidden_dim)
    dw2, db2 = init_linear(keys[5], hidden_dim, hidden_dim)
    dw3, db3 = init_linear(keys[6], hidden_dim, action_dim)
    return {
        "ew1": ew1, "eb1": eb1, "ew2": ew2, "eb2": eb2,
        "mw": mw, "mb": mb, "lw": lw, "lb": lb,
        "dw1": dw1, "db1": db1, "dw2": dw2, "db2": db2, "dw3": dw3, "db3": db3,
    }


def reference_forward(state, action, noise, p):
    """Pure-JAX reference of BehaviorVAE.forward with the same noise."""
    x = jnp.concatenate([state, action], axis=1)
    h = jnp.maximum(x @ p["ew1"] + p["eb1"], 0.0)
    h = jnp.maximum(h @ p["ew2"] + p["eb2"], 0.0)
    mean = h @ p["mw"] + p["mb"]
    log_std = jnp.clip(h @ p["lw"] + p["lb"], -4.0, 15.0)
    std = jnp.exp(log_std)
    z = mean + std * noise
    d = jnp.maximum(jnp.concatenate([state, z], axis=1) @ p["dw1"] + p["db1"], 0.0)
    d = jnp.maximum(d @ p["dw2"] + p["db2"], 0.0)
    recon = jnp.tanh(d @ p["dw3"] + p["db3"])
    return recon, mean, std


if __name__ == "__main__":
    state_dim, action_dim, hidden_dim = 12, 4, 32
    latent_dim = 2 * action_dim  # module default: latent_dim = 2 * action_dim
    batch = 16

    key = jax.random.PRNGKey(0)
    k_state, k_action, k_noise, k_params = jax.random.split(key, 4)

    state = jax.random.normal(k_state, (batch, state_dim), jnp.float32)
    action = jnp.tanh(jax.random.normal(k_action, (batch, action_dim), jnp.float32))
    noise = jax.random.normal(k_noise, (batch, latent_dim), jnp.float32)  # randn_like(std)

    params = init_params(k_params, state_dim, action_dim, latent_dim, hidden_dim)
    packed, offs = pack_params(params, state_dim, action_dim, latent_dim, hidden_dim)

    recon, mean, std = behavior_vae_forward(
        state, action, noise, packed, offs,
        dims=(state_dim, action_dim, latent_dim, hidden_dim),
    )
    jax.block_until_ready((recon, mean, std))

    # numerical check against pure-JAX reference
    r_ref, m_ref, s_ref = reference_forward(state, action, noise, params)
    assert jnp.allclose(recon, r_ref, atol=1e-5, rtol=1e-5)
    assert jnp.allclose(mean, m_ref, atol=1e-5, rtol=1e-5)
    assert jnp.allclose(std, s_ref, atol=1e-5, rtol=1e-5)

    print("KERNEL_OK")
</pallas_src>

<mosaic_0001>
module attributes {stable_mosaic.version = 11 : i64} {
  func.func @behavior_vae_kernel(%arg0: i32, %arg1: memref<16x12xf32, #tpu.memory_space<vmem>>, %arg2: memref<16x4xf32, #tpu.memory_space<vmem>>, %arg3: memref<16x8xf32, #tpu.memory_space<vmem>>, %arg4: memref<184x32xf32, #tpu.memory_space<vmem>>, %arg5: memref<16x20xf32, #tpu.memory_space<vmem>>) attributes {dimension_semantics = [#tpu.dimension_semantics<parallel>], iteration_bounds = array<i64: 1>, scalar_prefetch = 0 : i64, scratch_operands = 0 : i64, tpu.core_type = #tpu.core_type<tc>, window_params = [{transform_indices = @transform_0, window_bounds = array<i64: 16, 12>}, {transform_indices = @transform_1, window_bounds = array<i64: 16, 4>}, {transform_indices = @transform_2, window_bounds = array<i64: 16, 8>}, {pipeline_mode = #tpu.pipeline_mode<synchronous>, transform_indices = @transform_3, window_bounds = array<i64: 184, 32>}, {transform_indices = @transform_4, window_bounds = array<i64: 16, 20>}]} {
    %c0 = arith.constant 0 : index
    %c0_0 = arith.constant 0 : index
    %0 = vector.load %arg1[%c0, %c0_0] : memref<16x12xf32, #tpu.memory_space<vmem>>, vector<16x12xf32>
    %c0_1 = arith.constant 0 : index
    %c0_2 = arith.constant 0 : index
    %1 = vector.load %arg2[%c0_1, %c0_2] : memref<16x4xf32, #tpu.memory_space<vmem>>, vector<16x4xf32>
    %c0_3 = arith.constant 0 : index
    %c0_4 = arith.constant 0 : index
    %2 = vector.load %arg4[%c0_3, %c0_4] : memref<184x32xf32, #tpu.memory_space<vmem>>, vector<12x32xf32>
    %c16 = arith.constant 16 : index
    %c0_5 = arith.constant 0 : index
    %3 = vector.load %arg4[%c16, %c0_5] : memref<184x32xf32, #tpu.memory_space<vmem>>, vector<4x32xf32>
    %c24 = arith.constant 24 : index
    %c0_6 = arith.constant 0 : index
    %4 = vector.load %arg4[%c24, %c0_6] : memref<184x32xf32, #tpu.memory_space<vmem>>, vector<32x32xf32>
    %c56 = arith.constant 56 : index
    %c0_7 = arith.constant 0 : index
    %5 = vector.load %arg4[%c56, %c0_7] : memref<184x32xf32, #tpu.memory_space<vmem>>, vector<32x16xf32>
    %c88 = arith.constant 88 : index
    %c0_8 = arith.constant 0 : index
    %6 = vector.load %arg4[%c88, %c0_8] : memref<184x32xf32, #tpu.memory_space<vmem>>, vector<12x32xf32>
    %c104 = arith.constant 104 : index
    %c0_9 = arith.constant 0 : index
    %7 = vector.load %arg4[%c104, %c0_9] : memref<184x32xf32, #tpu.memory_space<vmem>>, vector<8x32xf32>
    %c112 = arith.constant 112 : index
    %c0_10 = arith.constant 0 : index
    %8 = vector.load %arg4[%c112, %c0_10] : memref<184x32xf32, #tpu.memory_space<vmem>>, vector<32x32xf32>
    %c144 = arith.constant 144 : index
    %c0_11 = arith.constant 0 : index
    %9 = vector.load %arg4[%c144, %c0_11] : memref<184x32xf32, #tpu.memory_space<vmem>>, vector<32x4xf32>
    %c176 = arith.constant 176 : index
    %c0_12 = arith.constant 0 : index
    %10 = vector.load %arg4[%c176, %c0_12] : memref<184x32xf32, #tpu.memory_space<vmem>>, vector<1x32xf32>
    %c177 = arith.constant 177 : index
    %c0_13 = arith.constant 0 : index
    %11 = vector.load %arg4[%c177, %c0_13] : memref<184x32xf32, #tpu.memory_space<vmem>>, vector<1x32xf32>
    %c178 = arith.constant 178 : index
    %c0_14 = arith.constant 0 : index
    %12 = vector.load %arg4[%c178, %c0_14] : memref<184x32xf32, #tpu.memory_space<vmem>>, vector<1x16xf32>
    %c179 = arith.constant 179 : index
    %c0_15 = arith.constant 0 : index
    %13 = vector.load %arg4[%c179, %c0_15] : memref<184x32xf32, #tpu.memory_space<vmem>>, vector<1x32xf32>
    %c180 = arith.constant 180 : index
    %c0_16 = arith.constant 0 : index
    %14 = vector.load %arg4[%c180, %c0_16] : memref<184x32xf32, #tpu.memory_space<vmem>>, vector<1x32xf32>
    %c181 = arith.constant 181 : index
    %c0_17 = arith.constant 0 : index
    %15 = vector.load %arg4[%c181, %c0_17] : memref<184x32xf32, #tpu.memory_space<vmem>>, vector<1x4xf32>
    %cst = arith.constant dense<0.000000e+00> : vector<16x32xf32>
    %16 = tpu.matmul %0, %2, %cst {dimension_numbers = #tpu.dot_dimension_numbers<[1], [0], [0], [1], [0, 0, 1, 1], [], []>} : vector<16x12xf32>, vector<12x32xf32>, vector<16x32xf32> -> vector<16x32xf32>
    %cst_18 = arith.constant dense<0.000000e+00> : vector<16x32xf32>
    %17 = tpu.matmul %1, %3, %cst_18 {dimension_numbers = #tpu.dot_dimension_numbers<[1], [0], [0], [1], [0, 0, 1, 1], [], []>} : vector<16x4xf32>, vector<4x32xf32>, vector<16x32xf32> -> vector<16x32xf32>
    %18 = arith.addf %16, %17 : vector<16x32xf32>
    %19 = vector.broadcast %10 : vector<1x32xf32> to vector<16x32xf32>
    %20 = arith.addf %18, %19 : vector<16x32xf32>
    %cst_19 = arith.constant 0.000000e+00 : f32
    %21 = vector.broadcast %cst_19 : f32 to vector<16x32xf32>
    %22 = arith.maximumf %20, %21 : vector<16x32xf32>
    %cst_20 = arith.constant dense<0.000000e+00> : vector<16x32xf32>
    %23 = tpu.matmul %22, %4, %cst_20 {dimension_numbers = #tpu.dot_dimension_numbers<[1], [0], [0], [1], [0, 0, 1, 1], [], []>} : vector<16x32xf32>, vector<32x32xf32>, vector<16x32xf32> -> vector<16x32xf32>
    %24 = vector.broadcast %11 : vector<1x32xf32> to vector<16x32xf32>
    %25 = arith.addf %23, %24 : vector<16x32xf32>
    %cst_21 = arith.constant 0.000000e+00 : f32
    %26 = vector.broadcast %cst_21 : f32 to vector<16x32xf32>
    %27 = arith.maximumf %25, %26 : vector<16x32xf32>
    %cst_22 = arith.constant dense<0.000000e+00> : vector<16x16xf32>
    %28 = tpu.matmul %27, %5, %cst_22 {dimension_numbers = #tpu.dot_dimension_numbers<[1], [0], [0], [1], [0, 0, 1, 1], [], []>} : vector<16x32xf32>, vector<32x16xf32>, vector<16x16xf32> -> vector<16x16xf32>
    %29 = vector.broadcast %12 : vector<1x16xf32> to vector<16x16xf32>
    %30 = arith.addf %28, %29 : vector<16x16xf32>
    %31 = vector.extract_strided_slice %30 {offsets = [0, 0], sizes = [16, 8], strides = [1, 1]} : vector<16x16xf32> to vector<16x8xf32>
    %32 = vector.extract_strided_slice %30 {offsets = [0, 8], sizes = [16, 8], strides = [1, 1]} : vector<16x16xf32> to vector<16x8xf32>
    %cst_23 = arith.constant -4.000000e+00 : f32
    %cst_24 = arith.constant 1.500000e+01 : f32
    %33 = vector.broadcast %cst_23 : f32 to vector<16x8xf32>
    %34 = arith.maximumf %33, %32 : vector<16x8xf32>
    %35 = vector.broadcast %cst_24 : f32 to vector<16x8xf32>
    %36 = arith.minimumf %35, %34 : vector<16x8xf32>
    %37 = math.exp %36 : vector<16x8xf32>
    %c0_25 = arith.constant 0 : index
    %c0_26 = arith.constant 0 : index
    %38 = vector.load %arg3[%c0_25, %c0_26] : memref<16x8xf32, #tpu.memory_space<vmem>>, vector<16x8xf32>
    %39 = arith.mulf %37, %38 : vector<16x8xf32>
    %40 = arith.addf %31, %39 : vector<16x8xf32>
    %cst_27 = arith.constant dense<0.000000e+00> : vector<16x32xf32>
    %41 = tpu.matmul %0, %6, %cst_27 {dimension_numbers = #tpu.dot_dimension_numbers<[1], [0], [0], [1], [0, 0, 1, 1], [], []>} : vector<16x12xf32>, vector<12x32xf32>, vector<16x32xf32> -> vector<16x32xf32>
    %cst_28 = arith.constant dense<0.000000e+00> : vector<16x32xf32>
    %42 = tpu.matmul %40, %7, %cst_28 {dimension_numbers = #tpu.dot_dimension_numbers<[1], [0], [0], [1], [0, 0, 1, 1], [], []>} : vector<16x8xf32>, vector<8x32xf32>, vector<16x32xf32> -> vector<16x32xf32>
    %43 = arith.addf %41, %42 : vector<16x32xf32>
    %44 = vector.broadcast %13 : vector<1x32xf32> to vector<16x32xf32>
    %45 = arith.addf %43, %44 : vector<16x32xf32>
    %cst_29 = arith.constant 0.000000e+00 : f32
    %46 = vector.broadcast %cst_29 : f32 to vector<16x32xf32>
    %47 = arith.maximumf %45, %46 : vector<16x32xf32>
    %cst_30 = arith.constant dense<0.000000e+00> : vector<16x32xf32>
    %48 = tpu.matmul %47, %8, %cst_30 {dimension_numbers = #tpu.dot_dimension_numbers<[1], [0], [0], [1], [0, 0, 1, 1], [], []>} : vector<16x32xf32>, vector<32x32xf32>, vector<16x32xf32> -> vector<16x32xf32>
    %49 = vector.broadcast %14 : vector<1x32xf32> to vector<16x32xf32>
    %50 = arith.addf %48, %49 : vector<16x32xf32>
    %cst_31 = arith.constant 0.000000e+00 : f32
    %51 = vector.broadcast %cst_31 : f32 to vector<16x32xf32>
    %52 = arith.maximumf %50, %51 : vector<16x32xf32>
    %cst_32 = arith.constant dense<0.000000e+00> : vector<16x4xf32>
    %53 = tpu.matmul %52, %9, %cst_32 {dimension_numbers = #tpu.dot_dimension_numbers<[1], [0], [0], [1], [0, 0, 1, 1], [], []>} : vector<16x32xf32>, vector<32x4xf32>, vector<16x4xf32> -> vector<16x4xf32>
    %54 = vector.broadcast %15 : vector<1x4xf32> to vector<16x4xf32>
    %55 = arith.addf %53, %54 : vector<16x4xf32>
    %56 = math.tanh %55 : vector<16x4xf32>
    %57 = tpu.concatenate %31, %37, %56 in 1 : vector<16x8xf32>, vector<16x8xf32>, vector<16x4xf32> -> vector<16x20xf32>
    %c0_33 = arith.constant 0 : index
    %c0_34 = arith.constant 0 : index
    %58 = vector.load %arg5[%c0_33, %c0_34] : memref<16x20xf32, #tpu.memory_space<vmem>>, vector<16x20xf32>
    tpu.vector_store %arg5[%c0_33, %c0_34], %57 {strides = array<i32>} : memref<16x20xf32, #tpu.memory_space<vmem>>, vector<16x20xf32>,
    return
  }
  func.func @transform_0(%arg0: i32) -> (i32, i32) {
    %c0_i32 = arith.constant 0 : i32
    %c0_i32_0 = arith.constant 0 : i32
    return %arg0, %c0_i32 : i32, i32
  }
  func.func @transform_1(%arg0: i32) -> (i32, i32) {
    %c0_i32 = arith.constant 0 : i32
    %c0_i32_0 = arith.constant 0 : i32
    return %arg0, %c0_i32 : i32, i32
  }
  func.func @transform_2(%arg0: i32) -> (i32, i32) {
    %c0_i32 = arith.constant 0 : i32
    %c0_i32_0 = arith.constant 0 : i32
    return %arg0, %c0_i32 : i32, i32
  }
  func.func @transform_3(%arg0: i32) -> (i32, i32) {
    %c0_i32 = arith.constant 0 : i32
    %c0_i32_0 = arith.constant 0 : i32
    %c0_i32_1 = arith.constant 0 : i32
    return %c0_i32, %c0_i32_0 : i32, i32
  }
  func.func @transform_4(%arg0: i32) -> (i32, i32) {
    %c0_i32 = arith.constant 0 : i32
    %c0_i32_0 = arith.constant 0 : i32
    return %arg0, %c0_i32 : i32, i32
  }
}

</mosaic_0001>

<llo_original>
// kernel: tpu_custom_call.1
$region0: #{tpu_custom_call.1}
  #allocation0 [shape = 'u32[]', space=smem, size = 0x4, offset = 0x4, fixed_abs, tag = 'smem constant byte address 0x4 - core index']
  #allocation1 [shape = 'u32[72,128]{1,0:T(1,128)}', space=vmem, size = 0x9000, scoped, tag = 'internal scratch']
  %s0 = inlined_call_operand.vmem [shape: f32[16,12], index: 0, kind: input, shape index: {}]
  %s1 = inlined_call_operand.vmem [shape: f32[16,4], index: 1, kind: input, shape index: {}]
  %s2 = inlined_call_operand.vmem [shape: f32[16,8], index: 2, kind: input, shape index: {}]
  %s3 = inlined_call_operand.vmem [shape: f32[184,32], index: 3, kind: input, shape index: {}]
  %s4 = inlined_call_operand.hbm [shape: f32[16,20], index: 4, kind: output, shape index: {}]
  %s5 = sld [smem:[#allocation0]]
  $region26: #{tpu_custom_call.1} parent=0
    _
  %s7 = ssub.s32 1, %s5
  %s8 = scalar_select 0, %s7, %s5
  $region1: #{tpu_custom_call.1} parent=0
    #allocation2 [shape = 'u8[8192]{0}', space=vmem, size = 0x2000, scoped, tag = 'output window, operand 0, single buffered']
    #allocation3 [shape = 's32[1]{0}', space=sflag, size = 0x4, scoped, tag = 'scoped memory for tpu_custom_call.1']
    %9 = vsyncpa [#allocation3], 0
    // Predicated region
    $region2: #{tpu_custom_call.1} parent=1 // pred_check
      _
    $region3: #{tpu_custom_call.1} parent=1 // pred_check_branch
      %11 = sbr.rel (0) target = $region5
    $region4: #{tpu_custom_call.1} parent=1 // pred_region
      _
    $region5: #{tpu_custom_call.1} parent=1 // pred_fallthru
      _
    // Predicated region
    $region6: #{tpu_custom_call.1} parent=1 // pred_check
      _
    $region7: #{tpu_custom_call.1} parent=1 // pred_check_branch
      %13 = sbr.rel (0) target = $region9
    $region8: #{tpu_custom_call.1} parent=1 // pred_region
      _
    $region9: #{tpu_custom_call.1} parent=1 // pred_fallthru
      _
    // Predicated region
    $region10: #{tpu_custom_call.1} parent=1 // pred_check
      _
    $region11: #{tpu_custom_call.1} parent=1 // pred_check_branch
      %15 = sbr.rel (0) target = $region13
    $region12: #{tpu_custom_call.1} parent=1 // pred_region
      _
    $region13: #{tpu_custom_call.1} parent=1 // pred_fallthru
      _
    // Predicated region
    $region14: #{tpu_custom_call.1} parent=1 // pred_check
      _
    $region15: #{tpu_custom_call.1} parent=1 // pred_check_branch
      %17 = sbr.rel (0) target = $region17
    $region16: #{tpu_custom_call.1} parent=1 // pred_region
      _
    $region17: #{tpu_custom_call.1} parent=1 // pred_fallthru
      _
    %v18 = vld [vmem:[%s0] sm:$0xff]
    %v19 = vld [vmem:[%s0 + $0x8] sm:$0xff]
    %v20 = vld [vmem:[%s1] sm:$0xff]
    %v21 = vld [vmem:[%s1 + $0x8] sm:$0xff]
    %v22 = vld [vmem:[%s3] sm:$0xff]
    %v23 = vld [vmem:[%s3 + $0x8] sm:$0xf]
    %v24 = vld [vmem:[%s3 + $0x10] sm:$0xf]
    %v25 = vld [vmem:[%s3 + $0x18] sm:$0xff]
    %v26 = vld [vmem:[%s3 + $0x20] sm:$0xff]
    %v27 = vld [vmem:[%s3 + $0x28] sm:$0xff]
    %v28 = vld [vmem:[%s3 + $0x30] sm:$0xff]
    %v29 = vld [vmem:[%s3 + $0x38] sm:$0xff]
    %v30 = vld [vmem:[%s3 + $0x40] sm:$0xff]
    %v31 = vld [vmem:[%s3 + $0x48] sm:$0xff]
    %v32 = vld [vmem:[%s3 + $0x50] sm:$0xff]
    %v33 = vld [vmem:[%s3 + $0x58] sm:$0xff]
    %v34 = vld [vmem:[%s3 + $0x60] sm:$0xf]
    %v35 = vld [vmem:[%s3 + $0x68] sm:$0xff]
    %v36 = vld [vmem:[%s3 + $0x70] sm:$0xff]
    %v37 = vld [vmem:[%s3 + $0x78] sm:$0xff]
    %v38 = vld [vmem:[%s3 + $0x80] sm:$0xff]
    %v39 = vld [vmem:[%s3 + $0x88] sm:$0xff]
    %v40 = vld [vmem:[%s3 + $0x90] sm:$0xff]
    %v41 = vld [vmem:[%s3 + $0x98] sm:$0xff]
    %v42 = vld [vmem:[%s3 + $0xa0] sm:$0xff]
    %v43 = vld [vmem:[%s3 + $0xa8] sm:$0xff]
    %v44 = vld [vmem:[%s3 + $0xb0] sm:$0x1]
    %v45 = vld [vmem:[%s3 + $0xb1] sm:$0x1]
    %v46 = vld [vmem:[%s3 + $0xb2] sm:$0x1]
    %v47 = vld [vmem:[%s3 + $0xb3] sm:$0x1]
    %v48 = vld [vmem:[%s3 + $0xb4] sm:$0x1]
    %v49 = vld [vmem:[%s3 + $0xb5] sm:$0x1]
    %vm50 = vcmask 31744
    %v52 = vsel %vm50, %v20, 0
    %v55 = vsel %vm50, %v21, 0
    %vm57 = vcmask 1043456
    %v59 = vsel %vm57, %v24, 0
    %61 = vmatpush.msra.mxu0 0.0
    %62 = vmatpush.msra.mxu0 0.0
    %63 = vmatpush.msra.mxu0 0.0
    %64 = vmatpush.msra.mxu0 0.0
    %65 = vmatpush.msra.mxu0 0.0
    %66 = vmatpush.msra.mxu0 0.0
    %67 = vmatpush.msra.mxu0 0.0
    %68 = vmatpush.msra.mxu0 0.0
    %69 = vmatpush.msra.mxu0 0.0
    %70 = vmatpush.msra.mxu0 0.0
    %71 = vmatpush.msra.mxu0 0.0
    %72 = vmatpush.msra.mxu0 0.0
    %73 = vmatpush.msra.mxu0 0.0
    %74 = vmatpush.msra.mxu0 0.0
    %75 = vmatpush.msra.mxu0 0.0
    %76 = vmatpush.msra.mxu0 %v59
    %77 = vmatmul.f32.gmra.mxu0 %v52
    %v78 = vpop.f32.mrf.mxu0
    %v79 = vadd.f32 0.0, %v78
    %80 = vmatmul.f32.gmra.mxu0 %v55
    %v81 = vpop.f32.mrf.mxu0
    %v82 = vadd.f32 0.0, %v81
    %83 = vdwg.mxu0
    %vm84 = vcmask 97280
    %v86 = vsel %vm84, %v18, 0
    %v89 = vsel %vm84, %v19, 0
    %v92 = vsel %vm57, %v23, 0
    %94 = vmatpush.msra.mxu0 0.0
    %95 = vmatpush.msra.mxu0 0.0
    %96 = vmatpush.msra.mxu0 0.0
    %97 = vmatpush.msra.mxu0 0.0
    %98 = vmatpush.msra.mxu0 0.0
    %99 = vmatpush.msra.mxu0 0.0
    %100 = vmatpush.msra.mxu0 0.0
    %101 = vmatpush.msra.mxu0 0.0
    %102 = vmatpush.msra.mxu0 0.0
    %103 = vmatpush.msra.mxu0 0.0
    %104 = vmatpush.msra.mxu0 0.0
    %105 = vmatpush.msra.mxu0 0.0
    %106 = vmatpush.msra.mxu0 0.0
    %107 = vmatpush.msra.mxu0 0.0
    %108 = vmatpush.msra.mxu0 %v92
    %109 = vmatpush.msra.mxu0 %v22
    %110 = vmatmul.f32.gmra.mxu0 %v86
    %v111 = vpop.f32.mrf.mxu0
    %v112 = vadd.f32 %v79, %v111
    %113 = vmatmul.f32.gmra.mxu0 %v89
    %v114 = vpop.f32.mrf.mxu0
    %v115 = vadd.f32 %v82, %v114
    %116 = vdwg.mxu0
    %v117 = vperm.slane %v44, 0
    %v118 = vadd.f32 %v112, %v117
    %v119 = vadd.f32 %v115, %v117
    %v120 = vmax.f32 %v118, 0.0
    %v121 = vmax.f32 %v119, 0.0
    %v122 = vperm.slane %v45, 0
    %vm123 = vcmask 261120
    %v125 = vsel %vm123, %v120, 0
    %v128 = vsel %vm123, %v121, 0
    %130 = vmatpush.msra.mxu0 0.0
    %131 = vmatpush.msra.mxu0 0.0
    %132 = vmatpush.msra.mxu0 0.0
    %133 = vmatpush.msra.mxu0 0.0
    %134 = vmatpush.msra.mxu0 0.0
    %135 = vmatpush.msra.mxu0 0.0
    %136 = vmatpush.msra.mxu0 0.0
    %137 = vmatpush.msra.mxu0 0.0
    %138 = vmatpush.msra.mxu0 0.0
    %139 = vmatpush.msra.mxu0 0.0
    %140 = vmatpush.msra.mxu0 0.0
    %141 = vmatpush.msra.mxu0 0.0
    %142 = vmatpush.msra.mxu0 %v28
    %143 = vmatpush.msra.mxu0 %v27
    %144 = vmatpush.msra.mxu0 %v26
    %145 = vmatpush.msra.mxu0 %v25
    %146 = vmatmul.f32.gmra.mxu0 %v125
    %v147 = vpop.f32.mrf.mxu0
    %v148 = vadd.f32 %v122, %v147
    %149 = vmatmul.f32.gmra.mxu0 %v128
    %v150 = vpop.f32.mrf.mxu0
    %v151 = vadd.f32 %v122, %v150
    %152 = vdwg.mxu0
    %v153 = vmax.f32 %v148, 0.0
    %v154 = vmax.f32 %v151, 0.0
    %v155 = vperm.slane %v46, 0
    %v157 = vsel %vm123, %v153, 0
    %v160 = vsel %vm123, %v154, 0
    %162 = vmatpush.msra.mxu0 0.0
    %163 = vmatpush.msra.mxu0 0.0
    %164 = vmatpush.msra.mxu0 0.0
    %165 = vmatpush.msra.mxu0 0.0
    %166 = vmatpush.msra.mxu0 0.0
    %167 = vmatpush.msra.mxu0 0.0
    %168 = vmatpush.msra.mxu0 0.0
    %169 = vmatpush.msra.mxu0 0.0
    %170 = vmatpush.msra.mxu0 0.0
    %171 = vmatpush.msra.mxu0 0.0
    %172 = vmatpush.msra.mxu0 0.0
    %173 = vmatpush.msra.mxu0 0.0
    %174 = vmatpush.msra.mxu0 %v32
    %175 = vmatpush.msra.mxu0 %v31
    %176 = vmatpush.msra.mxu0 %v30
    %177 = vmatpush.msra.mxu0 %v29
    %178 = vmatmul.f32.gmra.mxu0 %v157
    %v179 = vpop.f32.mrf.mxu0
    %v180 = vadd.f32 %v155, %v179
    %181 = vmatmul.f32.gmra.mxu0 %v160
    %v182 = vpop.f32.mrf.mxu0
    %v183 = vadd.f32 %v155, %v182
    %184 = vdwg.mxu0
    %v185 = vmax.f32 %v180, -4.0
    %v186 = vmax.f32 %v183, -4.0
    %v187 = vmin.f32 %v185, 15.0
    %v188 = vmin.f32 %v186, 15.0
    %v189 = vmul.f32 %v187, 1.442695
    %v190 = vpow.pop %v189
    %v191 = vmul.f32 %v188, 1.442695
    %v192 = vpow.pop %v191
    %v193 = vld [vmem:[%s2] sm:$0xff]
    %v194 = vld [vmem:[%s2 + $0x8] sm:$0xff]
    %197 = vrot.lane.b32.xlu0 %v193, 8
    %v198 = vpop.permute.xlu0 %197
    %199 = vrot.lane.b32.xlu0 %v194, 8
    %v200 = vpop.permute.xlu0 %199
    %v203 = vmul.f32 %v190, %v198
    %v204 = vmul.f32 %v192, %v200
    %207 = vrot.lane.b32.xlu0 %v203, 120
    %v208 = vpop.permute.xlu0 %207
    %209 = vrot.lane.b32.xlu0 %v204, 120
    %v210 = vpop.permute.xlu0 %209
    %v213 = vadd.f32 %v180, %v208
    %v214 = vadd.f32 %v183, %v210
    %vm215 = vcmask 64512
    %v217 = vsel %vm215, %v213, 0
    %v220 = vsel %vm215, %v214, 0
    %222 = vmatpush.msra.mxu0 0.0
    %223 = vmatpush.msra.mxu0 0.0
    %224 = vmatpush.msra.mxu0 0.0
    %225 = vmatpush.msra.mxu0 0.0
    %226 = vmatpush.msra.mxu0 0.0
    %227 = vmatpush.msra.mxu0 0.0
    %228 = vmatpush.msra.mxu0 0.0
    %229 = vmatpush.msra.mxu0 0.0
    %230 = vmatpush.msra.mxu0 0.0
    %231 = vmatpush.msra.mxu0 0.0
    %232 = vmatpush.msra.mxu0 0.0
    %233 = vmatpush.msra.mxu0 0.0
    %234 = vmatpush.msra.mxu0 0.0
    %235 = vmatpush.msra.mxu0 0.0
    %236 = vmatpush.msra.mxu0 0.0
    %237 = vmatpush.msra.mxu0 %v35
    %238 = vmatmul.f32.gmra.mxu0 %v217
    %v239 = vpop.f32.mrf.mxu0
    %v240 = vadd.f32 0.0, %v239
    %241 = vmatmul.f32.gmra.mxu0 %v220
    %v242 = vpop.f32.mrf.mxu0
    %v243 = vadd.f32 0.0, %v242
    %244 = vdwg.mxu0
    %v246 = vsel %vm57, %v34, 0
    %248 = vmatpush.msra.mxu0 0.0
    %249 = vmatpush.msra.mxu0 0.0
    %250 = vmatpush.msra.mxu0 0.0
    %251 = vmatpush.msra.mxu0 0.0
    %252 = vmatpush.msra.mxu0 0.0
    %253 = vmatpush.msra.mxu0 0.0
    %254 = vmatpush.msra.mxu0 0.0
    %255 = vmatpush.msra.mxu0 0.0
    %256 = vmatpush.msra.mxu0 0.0
    %257 = vmatpush.msra.mxu0 0.0
    %258 = vmatpush.msra.mxu0 0.0
    %259 = vmatpush.msra.mxu0 0.0
    %260 = vmatpush.msra.mxu0 0.0
    %261 = vmatpush.msra.mxu0 0.0
    %262 = vmatpush.msra.mxu0 %v246
    %263 = vmatpush.msra.mxu0 %v33
    %264 = vmatmul.f32.gmra.mxu0 %v86
    %v265 = vpop.f32.mrf.mxu0
    %v266 = vadd.f32 %v240, %v265
    %267 = vmatmul.f32.gmra.mxu0 %v89
    %v268 = vpop.f32.mrf.mxu0
    %v269 = vadd.f32 %v243, %v268
    %270 = vdwg.mxu0
    %v271 = vperm.slane %v47, 0
    %v272 = vadd.f32 %v266, %v271
    %v273 = vadd.f32 %v269, %v271
    %v274 = vmax.f32 %v272, 0.0
    %v275 = vmax.f32 %v273, 0.0
    %v276 = vperm.slane %v48, 0
    %v278 = vsel %vm123, %v274, 0
    %v281 = vsel %vm123, %v275, 0
    %283 = vmatpush.msra.mxu0 0.0
    %284 = vmatpush.msra.mxu0 0.0
    %285 = vmatpush.msra.mxu0 0.0
    %286 = vmatpush.msra.mxu0 0.0
    %287 = vmatpush.msra.mxu0 0.0
    %288 = vmatpush.msra.mxu0 0.0
    %289 = vmatpush.msra.mxu0 0.0
    %290 = vmatpush.msra.mxu0 0.0
    %291 = vmatpush.msra.mxu0 0.0
    %292 = vmatpush.msra.mxu0 0.0
    %293 = vmatpush.msra.mxu0 0.0
    %294 = vmatpush.msra.mxu0 0.0
    %295 = vmatpush.msra.mxu0 %v39
    %296 = vmatpush.msra.mxu0 %v38
    %297 = vmatpush.msra.mxu0 %v37
    %298 = vmatpush.msra.mxu0 %v36
    %299 = vmatmul.f32.gmra.mxu0 %v278
    %v300 = vpop.f32.mrf.mxu0
    %v301 = vadd.f32 %v276, %v300
    %302 = vmatmul.f32.gmra.mxu0 %v281
    %v303 = vpop.f32.mrf.mxu0
    %v304 = vadd.f32 %v276, %v303
    %305 = vdwg.mxu0
    %v306 = vmax.f32 %v301, 0.0
    %v307 = vmax.f32 %v304, 0.0
    %v308 = vperm.slane %v49, 0
    %v310 = vsel %vm123, %v306, 0
    %v313 = vsel %vm123, %v307, 0
    %315 = vmatpush.msra.mxu0 0.0
    %316 = vmatpush.msra.mxu0 0.0
    %317 = vmatpush.msra.mxu0 0.0
    %318 = vmatpush.msra.mxu0 0.0
    %319 = vmatpush.msra.mxu0 0.0
    %320 = vmatpush.msra.mxu0 0.0
    %321 = vmatpush.msra.mxu0 0.0
    %322 = vmatpush.msra.mxu0 0.0
    %323 = vmatpush.msra.mxu0 0.0
    %324 = vmatpush.msra.mxu0 0.0
    %325 = vmatpush.msra.mxu0 0.0
    %326 = vmatpush.msra.mxu0 0.0
    %327 = vmatpush.msra.mxu0 %v43
    %328 = vmatpush.msra.mxu0 %v42
    %329 = vmatpush.msra.mxu0 %v41
    %330 = vmatpush.msra.mxu0 %v40
    %331 = vmatmul.f32.gmra.mxu0 %v310
    %v332 = vpop.f32.mrf.mxu0
    %v333 = vadd.f32 %v308, %v332
    %334 = vmatmul.f32.gmra.mxu0 %v313
    %v335 = vpop.f32.mrf.mxu0
    %v336 = vadd.f32 %v308, %v335
    %337 = vdwg.mxu0
    %v338 = vtanh.pop %v333
    %v339 = vtanh.pop %v336
    %342 = vrot.lane.b32.xlu0 %v338, 16
    %v343 = vpop.permute.xlu0 %342
    %344 = vrot.lane.b32.xlu0 %v339, 16
    %v345 = vpop.permute.xlu0 %344
    %v348 = vsel %vm215, %v180, %v190
    %v349 = vsel %vm215, %v183, %v192
    %vm350 = vcmask 130048
    %v351 = vsel %vm350, %v348, %v343
    %v352 = vsel %vm350, %v349, %v345
    %vm353 = vcmask 162816
    %354 = vst.msk [vmem:[#allocation2] sm:$0xff] %vm353, %v351
    %355 = vst.msk [vmem:[#allocation2 + $0x8] sm:$0xff] %vm353, %v352
    // Predicated region
    $region18: #{tpu_custom_call.1} parent=1 // pred_check
      _
    $region19: #{tpu_custom_call.1} parent=1 // pred_check_branch
      %357 = sbr.rel (0) target = $region21
    $region20: #{tpu_custom_call.1} parent=1 // pred_region
      %359 = vsyncadd [#allocation3], 0
      %s360 = sshll.u32 [#allocation2], 4
      %s361 = int_to_ptr.vmem [resolvable:$true] %s360
      %s362 = sshll.u32 %s4, 4
      %s363 = int_to_ptr.hbm [resolvable:$true] %s362
      %368 = dma.vmem_to_hbm [thread:$0]  %s361, 256, %s363, [#allocation3], 128, 128, 8
    $region21: #{tpu_custom_call.1} parent=1 // pred_fallthru
      _
    // Predicated region
    $region22: #{tpu_custom_call.1} parent=1 // pred_check
      _
    $region23: #{tpu_custom_call.1} parent=1 // pred_check_branch
      %370 = sbr.rel (0) target = $region25
    $region24: #{tpu_custom_call.1} parent=1 // pred_region
      %372 = dma.done [#allocation3], 256
    $region25: #{tpu_custom_call.1} parent=1 // pred_fallthru
      _
    %373 = vsyncpa [#allocation3], 1

</llo_original>
